<compile_context>
chip_gen: v7x
topology: tpu7x:2x2x1
jax: 0.10.0
libtpu: 0.0.40
codegen_flags: <defaults>
</compile_context>

<pallas_src>
import jax
import jax.numpy as jnp
from jax.experimental import pallas as pl
from jax.experimental.pallas import tpu as pltpu

_LANE_WIDE = 1024            # lane-dense last dim for large tensors (mult of 128)
_LANE_MIN = 128              # minimum lane width
_TARGET_BLOCK_BYTES = 2 * 1024 * 1024   # ~2 MiB per block


def _sublane_multiple(dtype) -> int:
    """Dtype-aware sublane packing multiple: f32->8, bf16->16, int8/fp8->32."""
    itemsize = jnp.dtype(dtype).itemsize
    return max(8, 32 // max(itemsize, 1))


def _identity_kernel(x_ref, o_ref):
    # Elementwise pass-through on the current VMEM tile.
    o_ref[...] = x_ref[...]


def _identity_2d(x2d: jax.Array, tile_rows: int) -> jax.Array:
    rows, lane = x2d.shape
    grid = (rows // tile_rows,)  # rows is a multiple of tile_rows by construction
    return pl.pallas_call(
        _identity_kernel,
        out_shape=jax.ShapeDtypeStruct((rows, lane), x2d.dtype),
        grid_spec=pltpu.PrefetchScalarGridSpec(
            num_scalar_prefetch=0,
            grid=grid,
            in_specs=[pl.BlockSpec((tile_rows, lane), lambda i: (i, 0))],
            out_specs=pl.BlockSpec((tile_rows, lane), lambda i: (i, 0)),
        ),
        input_output_aliases={0: 0},  # donate the input buffer -> no extra HBM alloc
        compiler_params=pltpu.CompilerParams(
            dimension_semantics=("parallel",),
            vmem_limit_bytes=32 * 1024 * 1024,
        ),
    )(x2d)


@jax.jit
def base_model_forward(x_nchw: jax.Array) -> jax.Array:
    """Pallas 'forward' for the abstract BaseModel: identity over NCHW input."""
    orig_shape = x_nchw.shape
    dtype = x_nchw.dtype
    total = x_nchw.size
    itemsize = jnp.dtype(dtype).itemsize
    sub = _sublane_multiple(dtype)

    # Lane-dense last dim: 1024 lanes for large tensors, 128 minimum otherwise.
    lane = _LANE_WIDE if total >= _LANE_WIDE * sub else _LANE_MIN

    # Target ~2 MiB blocks, rounded to the dtype sublane multiple, but never
    # larger than what's needed to cover the data.
    tile_rows_target = max(sub, (_TARGET_BLOCK_BYTES // (lane * itemsize)) // sub * sub)
    rows_needed = pl.cdiv(total, lane)
    rows_needed = pl.cdiv(rows_needed, sub) * sub
    tile_rows = min(tile_rows_target, rows_needed)

    # Pad the flattened tensor up to a whole number of (tile_rows, lane) blocks.
    rows = pl.cdiv(rows_needed, tile_rows) * tile_rows
    padded_total = rows * lane

    x_flat = x_nchw.reshape(-1)
    if padded_total != total:
        x_flat = jnp.pad(x_flat, (0, padded_total - total))
    x2d = x_flat.reshape(rows, lane)

    out2d = _identity_2d(x2d, tile_rows)

    out_flat = out2d.reshape(-1)
    if padded_total != total:
        out_flat = out_flat[:total]
    return out_flat.reshape(orig_shape)


if __name__ == "__main__":
    key = jax.random.PRNGKey(0)
    # Small NCHW input consistent with a typical image-model BaseModel subclass.
    x = jax.random.normal(key, (2, 4, 16, 16), dtype=jnp.float32)

    y = base_model_forward(x)
    jax.block_until_ready(y)

    # Identity semantics check (the only concrete semantics BaseModel defines).
    assert y.shape == x.shape and y.dtype == x.dtype
    assert bool(jnp.all(y == x))

    print("KERNEL_OK")
</pallas_src>

<mosaic_0001>
module attributes {stable_mosaic.version = 11 : i64} {
  func.func @_identity_kernel(%arg0: i32, %arg1: memref<16x128xf32, #tpu.memory_space<vmem>>, %arg2: memref<16x128xf32, #tpu.memory_space<vmem>>) attributes {dimension_semantics = [#tpu.dimension_semantics<parallel>], iteration_bounds = array<i64: 1>, scalar_prefetch = 0 : i64, scratch_operands = 0 : i64, tpu.core_type = #tpu.core_type<tc>, window_params = [{transform_indices = @transform_0, window_bounds = array<i64: 16, 128>}, {transform_indices = @transform_1, window_bounds = array<i64: 16, 128>}]} {
    %c0 = arith.constant 0 : index
    %c0_0 = arith.constant 0 : index
    %0 = vector.load %arg1[%c0, %c0_0] : memref<16x128xf32, #tpu.memory_space<vmem>>, vector<16x128xf32>
    %c0_1 = arith.constant 0 : index
    %c0_2 = arith.constant 0 : index
    %1 = vector.load %arg2[%c0_1, %c0_2] : memref<16x128xf32, #tpu.memory_space<vmem>>, vector<16x128xf32>
    tpu.vector_store %arg2[%c0_1, %c0_2], %0 {strides = array<i32>} : memref<16x128xf32, #tpu.memory_space<vmem>>, vector<16x128xf32>,
    return
  }
  func.func @transform_0(%arg0: i32) -> (i32, i32) {
    %c0_i32 = arith.constant 0 : i32
    %c0_i32_0 = arith.constant 0 : i32
    return %arg0, %c0_i32 : i32, i32
  }
  func.func @transform_1(%arg0: i32) -> (i32, i32) {
    %c0_i32 = arith.constant 0 : i32
    %c0_i32_0 = arith.constant 0 : i32
    return %arg0, %c0_i32 : i32, i32
  }
}

</mosaic_0001>

<llo_original>
// kernel: base_model_forward.1
$region0: #{base_model_forward.1}
  #allocation0 [shape = 'u32[]', space=smem, size = 0x4, offset = 0x4, fixed_abs, tag = 'smem constant byte address 0x4 - core index']
  #allocation1 [shape = 'u32[144,128]{1,0:T(1,128)}', space=vmem, size = 0x12000, scoped, tag = 'internal scratch']
  %s0 = inlined_call_operand.vmem [shape: f32[16,128], index: 0, kind: input, shape index: {}, may-alias: {0,1}]
  %s1 = inlined_call_operand.vmem [shape: f32[16,128], index: 1, kind: output, shape index: {}, may-alias: {0,1}]
  %s2 = sld [smem:[#allocation0]]
  $region14: #{base_model_forward.1} parent=0
    _
  %s4 = ssub.s32 1, %s2
  %s5 = scalar_select 0, %s4, %s2
  // Predicated region
  $region2: #{base_model_forward.1} parent=0 // pred_check
    _
  $region3: #{base_model_forward.1} parent=0 // pred_check_branch
    %7 = sbr.rel (0) target = $region5
  $region4: #{base_model_forward.1} parent=0 // pred_region
    _
  $region5: #{base_model_forward.1} parent=0 // pred_fallthru
    _
  %v8 = vld [vmem:[%s0] sm:$0xff]
  %v9 = vld [vmem:[%s0 + $0x8] sm:$0xff]
  %10 = vst [vmem:[%s1] sm:$0xff] %v8
  %11 = vst [vmem:[%s1 + $0x8] sm:$0xff] %v9
  // Predicated region
  $region6: #{base_model_forward.1} parent=0 // pred_check
    _
  $region7: #{base_model_forward.1} parent=0 // pred_check_branch
    %13 = sbr.rel (0) target = $region9
  $region8: #{base_model_forward.1} parent=0 // pred_region
    _
  $region9: #{base_model_forward.1} parent=0 // pred_fallthru
    _
  // Predicated region
  $region10: #{base_model_forward.1} parent=0 // pred_check
    _
  $region11: #{base_model_forward.1} parent=0 // pred_check_branch
    %15 = sbr.rel (0) target = $region13
  $region12: #{base_model_forward.1} parent=0 // pred_region
    _
  $region13: #{base_model_forward.1} parent=0 // pred_fallthru
    _

</llo_original>
